<compile_context>
chip_gen: v7x
topology: tpu7x:2x2x1
jax: 0.10.0
libtpu: 0.0.40
codegen_flags: <defaults>
</compile_context>

<pallas_src>
import functools

import jax
import jax.numpy as jnp
from jax import lax
from jax.experimental import pallas as pl
from jax.experimental.pallas import tpu as pltpu

EPS = 1e-5


def _layernorm_kernel(x_ref, w_ref, o_ref, *, inv_dim):
    # x_ref: (row_tile, dim) tile of flattened rows; w_ref: (1, dim) resident.
    x = x_ref[...].astype(jnp.float32)
    s = jnp.sum(x, axis=-1, keepdims=True)
    ss = jnp.sum(x * x, axis=-1, keepdims=True)
    mean = s * inv_dim
    var = jnp.maximum(ss * inv_dim - mean * mean, 0.0)
    inv = lax.rsqrt(var + EPS)
    o_ref[...] = ((x - mean) * inv) * w_ref[...].astype(jnp.float32)


def _choose_row_tile(rows, dim, itemsize):
    """Pick a row tile: ~4 MiB input blocks, multiple of 8, >=4 grid steps."""
    target_block_bytes = 4 << 20
    t = max(8, target_block_bytes // max(1, dim * itemsize))
    t = max(8, (t // 8) * 8)
    rows8 = ((rows + 7) // 8) * 8
    t = min(t, rows8)
    # Keep at least ~4 grid steps where the problem allows it (v7x has 2 TCs
    # per chip and the software pipeline needs something to overlap).
    while t > 8 and pl.cdiv(rows, t) < 4:
        t = max(8, ((t // 2) // 8) * 8)
    return t


@functools.partial(jax.jit, static_argnames=("row_tile",))
def layernorm(x, weight, *, row_tile=None):
    """LayerNorm over the last axis of x, scaled by `weight` (shape [dim])."""
    dim = weight.shape[-1]
    orig_shape = x.shape
    assert orig_shape[-1] == dim, "last axis of x must equal dim"
    # TODO(synk): for tiny hidden sizes (dim % 128 != 0, e.g. 32) lanes/stores
    # are partially masked; for production use a dim that is a multiple of 128.

    rows = 1
    for s in orig_shape[:-1]:
        rows *= s
    x2 = x.reshape(rows, dim)
    w2 = weight.reshape(1, dim)

    if row_tile is None:
        row_tile = _choose_row_tile(rows, dim, x2.dtype.itemsize)

    # VMEM: double-buffered input + double-buffered f32 output + weight.
    blk_in = row_tile * dim * x2.dtype.itemsize
    blk_out = row_tile * dim * 4
    needed = 2 * (blk_in + blk_out) + 2 * dim * 4 + (2 << 20)
    vmem_limit = int(min(max(needed, 24 << 20), 48 << 20))

    grid = (pl.cdiv(rows, row_tile),)  # ragged last block: no host-side padding

    out = pl.pallas_call(
        functools.partial(_layernorm_kernel, inv_dim=1.0 / dim),
        out_shape=jax.ShapeDtypeStruct((rows, dim), jnp.float32),
        grid_spec=pltpu.PrefetchScalarGridSpec(
            num_scalar_prefetch=0,
            grid=grid,
            in_specs=[
                pl.BlockSpec((row_tile, dim), lambda i: (i, 0)),
                pl.BlockSpec((1, dim), lambda i: (0, 0)),  # stays resident
            ],
            out_specs=pl.BlockSpec((row_tile, dim), lambda i: (i, 0)),
        ),
        compiler_params=pltpu.CompilerParams(
            dimension_semantics=("parallel",),
            vmem_limit_bytes=vmem_limit,
        ),
    )(x2, w2)

    return out.reshape(orig_shape[:-1] + (dim,))


if __name__ == "__main__":
    key = jax.random.PRNGKey(0)
    batch, seq, hidden = 2, 8, 32

    kx, kw = jax.random.split(key)
    x = jax.random.normal(kx, (batch, seq, hidden), dtype=jnp.float32)
    # nn.Parameter(torch.ones([dim])) -> init to ones; perturb deterministically
    # so the scaling path is actually exercised.
    weight = jnp.ones((hidden,), dtype=jnp.float32) + 0.1 * jax.random.normal(
        kw, (hidden,), dtype=jnp.float32
    )

    out = layernorm(x, weight)
    jax.block_until_ready(out)

    # Reference (same semantics as torch.nn.functional.layer_norm + scale).
    xf = x.astype(jnp.float32)
    mean = jnp.mean(xf, axis=-1, keepdims=True)
    var = jnp.mean((xf - mean) ** 2, axis=-1, keepdims=True)
    ref = (xf - mean) / jnp.sqrt(var + EPS) * weight
    assert out.shape == ref.shape and out.dtype == jnp.float32
    assert jnp.max(jnp.abs(out - ref)) < 1e-5

    # Also exercise a ragged row count (rows % row_tile != 0) and bf16 input.
    x3 = jax.random.normal(kx, (3, 7, hidden), dtype=jnp.bfloat16)
    out3 = layernorm(x3, weight)
    jax.block_until_ready(out3)
    x3f = x3.astype(jnp.float32)
    m3 = jnp.mean(x3f, axis=-1, keepdims=True)
    v3 = jnp.mean((x3f - m3) ** 2, axis=-1, keepdims=True)
    ref3 = (x3f - m3) / jnp.sqrt(v3 + EPS) * weight
    assert jnp.max(jnp.abs(out3 - ref3)) < 5e-3  # bf16 input quantization

    print("KERNEL_OK")
</pallas_src>

<mosaic_0001>
module attributes {stable_mosaic.version = 11 : i64} {
  func.func @_layernorm_kernel(%arg0: i32, %arg1: memref<8x32xf32, #tpu.memory_space<vmem>>, %arg2: memref<1x32xf32, #tpu.memory_space<vmem>>, %arg3: memref<8x32xf32, #tpu.memory_space<vmem>>) attributes {dimension_semantics = [#tpu.dimension_semantics<parallel>], iteration_bounds = array<i64: 2>, scalar_prefetch = 0 : i64, scratch_operands = 0 : i64, tpu.core_type = #tpu.core_type<tc>, window_params = [{transform_indices = @transform_0, window_bounds = array<i64: 8, 32>}, {pipeline_mode = #tpu.pipeline_mode<synchronous>, transform_indices = @transform_1, window_bounds = array<i64: 1, 32>}, {transform_indices = @transform_2, window_bounds = array<i64: 8, 32>}]} {
    %c0 = arith.constant 0 : index
    %c0_0 = arith.constant 0 : index
    %0 = vector.load %arg1[%c0, %c0_0] : memref<8x32xf32, #tpu.memory_space<vmem>>, vector<8x32xf32>
    %cst = arith.constant dense<0.000000e+00> : vector<8xf32>
    %1 = vector.multi_reduction <add>, %0, %cst [1] : vector<8x32xf32> to vector<8xf32>
    %2 = vector.shape_cast %1 : vector<8xf32> to vector<8x1xf32>
    %3 = arith.mulf %0, %0 : vector<8x32xf32>
    %cst_1 = arith.constant dense<0.000000e+00> : vector<8xf32>
    %4 = vector.multi_reduction <add>, %3, %cst_1 [1] : vector<8x32xf32> to vector<8xf32>
    %5 = vector.shape_cast %4 : vector<8xf32> to vector<8x1xf32>
    %cst_2 = arith.constant 3.125000e-02 : f32
    %6 = vector.broadcast %cst_2 : f32 to vector<8x1xf32>
    %7 = arith.mulf %2, %6 : vector<8x1xf32>
    %cst_3 = arith.constant 3.125000e-02 : f32
    %8 = vector.broadcast %cst_3 : f32 to vector<8x1xf32>
    %9 = arith.mulf %5, %8 : vector<8x1xf32>
    %10 = arith.mulf %7, %7 : vector<8x1xf32>
    %11 = arith.subf %9, %10 : vector<8x1xf32>
    %cst_4 = arith.constant 0.000000e+00 : f32
    %12 = vector.broadcast %cst_4 : f32 to vector<8x1xf32>
    %13 = arith.maximumf %11, %12 : vector<8x1xf32>
    %cst_5 = arith.constant 9.99999974E-6 : f32
    %14 = vector.broadcast %cst_5 : f32 to vector<8x1xf32>
    %15 = arith.addf %13, %14 : vector<8x1xf32>
    %16 = math.rsqrt %15 : vector<8x1xf32>
    %17 = vector.broadcast %7 : vector<8x1xf32> to vector<8x32xf32>
    %18 = arith.subf %0, %17 : vector<8x32xf32>
    %19 = vector.broadcast %16 : vector<8x1xf32> to vector<8x32xf32>
    %20 = arith.mulf %18, %19 : vector<8x32xf32>
    %c0_6 = arith.constant 0 : index
    %c0_7 = arith.constant 0 : index
    %21 = vector.load %arg2[%c0_6, %c0_7] : memref<1x32xf32, #tpu.memory_space<vmem>>, vector<1x32xf32>
    %22 = vector.broadcast %21 : vector<1x32xf32> to vector<8x32xf32>
    %23 = arith.mulf %20, %22 : vector<8x32xf32>
    %c0_8 = arith.constant 0 : index
    %c0_9 = arith.constant 0 : index
    %24 = vector.load %arg3[%c0_8, %c0_9] : memref<8x32xf32, #tpu.memory_space<vmem>>, vector<8x32xf32>
    tpu.vector_store %arg3[%c0_8, %c0_9], %23 {strides = array<i32>} : memref<8x32xf32, #tpu.memory_space<vmem>>, vector<8x32xf32>,
    return
  }
  func.func @transform_0(%arg0: i32) -> (i32, i32) {
    %c0_i32 = arith.constant 0 : i32
    %c0_i32_0 = arith.constant 0 : i32
    return %arg0, %c0_i32 : i32, i32
  }
  func.func @transform_1(%arg0: i32) -> (i32, i32) {
    %c0_i32 = arith.constant 0 : i32
    %c0_i32_0 = arith.constant 0 : i32
    %c0_i32_1 = arith.constant 0 : i32
    return %c0_i32, %c0_i32_0 : i32, i32
  }
  func.func @transform_2(%arg0: i32) -> (i32, i32) {
    %c0_i32 = arith.constant 0 : i32
    %c0_i32_0 = arith.constant 0 : i32
    return %arg0, %c0_i32 : i32, i32
  }
}

</mosaic_0001>

<llo_original>
// kernel: layernorm.1
$region0: #{layernorm.1}
  #allocation0 [shape = 'u32[]', space=smem, size = 0x4, offset = 0x4, fixed_abs, tag = 'smem constant byte address 0x4 - core index']
  #allocation1 [shape = 'u32[144,128]{1,0:T(1,128)}', space=vmem, size = 0x12000, scoped, tag = 'internal scratch']
  %s0 = inlined_call_operand.hbm [shape: f32[16,32], index: 0, kind: input, shape index: {}]
  %s1 = inlined_call_operand.vmem [shape: f32[1,32], index: 1, kind: input, shape index: {}]
  %s2 = inlined_call_operand.hbm [shape: f32[16,32], index: 2, kind: output, shape index: {}]
  %s3 = sld [smem:[#allocation0]]
  $region45: #{layernorm.1} parent=0
    _
  %s5 = ssub.s32 1, %s3
  %s6 = scalar_select 0, %s5, %s3
  $region1: #{layernorm.1} parent=0
    #allocation2 [shape = 'u8[8192]{0}', space=vmem, size = 0x2000, scoped, tag = 'input window, operand 0']
    #allocation3 [shape = 's32[2]{0}', space=sflag, size = 0x8, scoped, tag = 'scoped memory for layernorm.1']
    #allocation4 [shape = 's32[2]{0}', space=sflag, size = 0x8, scoped, tag = 'scoped memory for layernorm.1']
    #allocation5 [shape = 'u8[8192]{0}', space=vmem, size = 0x2000, scoped, tag = 'output window, operand 0']
    %7 = vsyncpa [#allocation3], 0
    %s8 = scalar_lea.sflag [#allocation3], 1
    %9 = vsyncpa %s8, 0
    %10 = vsyncpa [#allocation4], 0
    %s11 = scalar_lea.sflag [#allocation4], 1
    %12 = vsyncpa %s11, 0
    loop: start=0, step=1, limit=4
    $region2: #{layernorm.1} parent=1 // loop_pre_header
      _
    $region3: #{layernorm.1} parent=1 // loop_header
      %s14 = sphi 0, %s18
      %p15 = scmp.ge.s32.totalorder %s14, 4
      %s24 = sphi 0, %s26
      %s27 = sphi 0, %s24
      %s28 = sphi 0, %s27
      %s44 = sphi 0, %s28
      %s48 = sphi 0, %s48
      %s50 = sphi 0, %s48
      %s51 = sphi 0, %s50
      %s65 = sphi 0, %s51
      %s71 = sphi 0, %s73
      %s74 = sphi 0, %s71
      %s75 = sphi 0, %s74
      %s91 = sphi 0, %s75
    $region4: #{layernorm.1} parent=1 // loop_header_branch
      %17 = sbr.rel (%p15) target = $region8
    $region5: #{layernorm.1} parent=1 // loop_body
      %s19 = ssub.s32 %s14, 1
      %s20 = ssub.s32 %s14, 2
      %s21 = sadd.s32 %s14, 1
      %s22 = ssub.s32 %s14, %s21
      %p23 = scmp.eq.s32.totalorder %s22, 0
      %s25 = sadd.s32 %s24, 1
      %s26 = scalar_select %p23, %s24, %s25
      %p29 = pneg %p23
      %p30 = scmp.eq.s32.totalorder %s14, 1
      %p31 = por %p29, %p30
      %p32 = scmp.ne.s32.totalorder %s24, %s27
      %p33 = scmp.eq.s32.totalorder %s14, 0
      %p34 = por %p32, %p33
      %p35 = scmp.ne.s32.totalorder %s24, %s27
      %p36 = scmp.eq.s32.totalorder %s19, 1
      %p37 = por %p35, %p36
      %p38 = scmp.ne.s32.totalorder %s27, %s28
      %p39 = scmp.eq.s32.totalorder %s19, 0
      %p40 = por %p38, %p39
      %p41 = scmp.ne.s32.totalorder %s27, %s28
      %p42 = scmp.eq.s32.totalorder %s20, 1
      %p43 = por %p41, %p42
      %p45 = scmp.ne.s32.totalorder %s28, %s44
      %p46 = scmp.eq.s32.totalorder %s20, 0
      %p47 = por %p45, %p46
      %s49 = sadd.s32 %s48, 1
      %p52 = scmp.eq.s32.totalorder %s14, 1
      %p53 = scmp.ne.s32.totalorder %s48, %s50
      %p54 = scmp.eq.s32.totalorder %s14, 0
      %p55 = por %p53, %p54
      %p56 = scmp.ne.s32.totalorder %s48, %s50
      %p57 = scmp.eq.s32.totalorder %s19, 1
      %p58 = por %p56, %p57
      %p59 = scmp.ne.s32.totalorder %s50, %s51
      %p60 = scmp.eq.s32.totalorder %s19, 0
      %p61 = por %p59, %p60
      %p62 = scmp.ne.s32.totalorder %s50, %s51
      %p63 = scmp.eq.s32.totalorder %s20, 1
      %p64 = por %p62, %p63
      %p66 = scmp.ne.s32.totalorder %s51, %s65
      %p67 = scmp.eq.s32.totalorder %s20, 0
      %p68 = por %p66, %p67
      %s69 = ssub.s32 %s14, %s21
      %p70 = scmp.eq.s32.totalorder %s69, 0
      %s72 = sadd.s32 %s71, 1
      %s73 = scalar_select %p70, %s71, %s72
      %p76 = pneg %p70
      %p77 = scmp.eq.s32.totalorder %s14, 1
      %p78 = por %p76, %p77
      %p79 = scmp.ne.s32.totalorder %s71, %s74
      %p80 = scmp.eq.s32.totalorder %s14, 0
      %p81 = por %p79, %p80
      %p82 = scmp.ne.s32.totalorder %s71, %s74
      %p83 = scmp.eq.s32.totalorder %s19, 1
      %p84 = por %p82, %p83
      %p85 = scmp.ne.s32.totalorder %s74, %s75
      %p86 = scmp.eq.s32.totalorder %s19, 0
      %p87 = por %p85, %p86
      %p88 = scmp.ne.s32.totalorder %s74, %s75
      %p89 = scmp.eq.s32.totalorder %s20, 1
      %p90 = por %p88, %p89
      %p92 = scmp.ne.s32.totalorder %s75, %s91
      %p93 = scmp.eq.s32.totalorder %s20, 0
      %p94 = por %p92, %p93
      %p95 = scmp.le.s32.totalorder 1, %s14
      %p96 = scmp.lt.s32.totalorder %s14, 3
      %p97 = pnand %p95, %p96
      %p98 = pneg %p97
      // Predicated region
      $region9: #{layernorm.1} parent=5 // pred_check
        _
      $region10: #{layernorm.1} parent=5 // pred_check_branch
        %100 = sbr.rel (%p97) target = $region12
      $region11: #{layernorm.1} parent=5 // pred_region
        %s101 = ssub.s32 %s14, 1
        // Predicated region
        $region13: #{layernorm.1} parent=11 // pred_check
          %p102 = pneg %p61
        $region14: #{layernorm.1} parent=11 // pred_check_branch
          %104 = sbr.rel (%p102) target = $region16
        $region15: #{layernorm.1} parent=11 // pred_region
          _
        $region16: #{layernorm.1} parent=11 // pred_fallthru
          _
      $region12: #{layernorm.1} parent=5 // pred_fallthru
        _
      %p105 = scmp.lt.s32.totalorder %s14, 2
      // Predicated region
      $region17: #{layernorm.1} parent=5 // pred_check
        %p106 = pneg %p105
      $region18: #{layernorm.1} parent=5 // pred_check_branch
        %108 = sbr.rel (%p106) target = $region20
      $region19: #{layernorm.1} parent=5 // pred_region
        // Predicated region
        $region21: #{layernorm.1} parent=19 // pred_check
          %p109 = pneg %p34
        $region22: #{layernorm.1} parent=19 // pred_check_branch
          %111 = sbr.rel (%p109) target = $region24
        $region23: #{layernorm.1} parent=19 // pred_region
          %s112 = sand.u32 %s24, 1
          %s113 = scalar_lea.sflag [#allocation3], %s112
          %s114 = sand.u32 %s24, 1
          %s115 = smul.addr %s114, 8
          %s116 = scalar_lea.vmem [#allocation2], %s115
          %s118 = ssub.s32 128, 128
          %119 = vsyncadd %s113, %s118
          %s120 = smul.addr %s14, 128
          %s121 = scalar_lea.hbm %s0, %s120
          %s123 = sshll.u32 %s116, 4
          %s124 = int_to_ptr.vmem [resolvable:$true] %s123
          %126 = dma.hbm_to_vmem [thread:$0]  %s121, 128, %s124, %s113
        $region24: #{layernorm.1} parent=19 // pred_fallthru
          _
      $region20: #{layernorm.1} parent=5 // pred_fallthru
        _
      %p127 = scmp.le.s32.totalorder 1, %s14
      %p128 = scmp.lt.s32.totalorder %s14, 3
      %p129 = pnand %p127, %p128
      %p130 = pneg %p129
      // Predicated region
      $region25: #{layernorm.1} parent=5 // pred_check
        _
      $region26: #{layernorm.1} parent=5 // pred_check_branch
        %132 = sbr.rel (%p129) target = $region28
      $region27: #{layernorm.1} parent=5 // pred_region
        %s133 = ssub.s32 %s14, 1
        %s134 = sand.u32 %s27, 1
        %s135 = scalar_lea.sflag [#allocation3], %s134
        %s136 = sand.u32 %s27, 1
        %s137 = smul.addr %s136, 8
        %s138 = scalar_lea.vmem [#allocation2], %s137
        // Predicated region
        $region29: #{layernorm.1} parent=27 // pred_check
          %p139 = pneg %p40
        $region30: #{layernorm.1} parent=27 // pred_check_branch
          %141 = sbr.rel (%p139) target = $region32
        $region31: #{layernorm.1} parent=27 // pred_region
          %142 = dma.done %s135, 128
        $region32: #{layernorm.1} parent=27 // pred_fallthru
          _
        %s143 = sand.u32 %s27, 1
        %s144 = scalar_lea.sflag [#allocation3], %s143
        %s145 = sand.u32 %s27, 1
        %s146 = smul.addr %s145, 8
        %s147 = scalar_lea.vmem [#allocation2], %s146
        %p148 = pneg %p40
        %p149 = pneg %p37
        %p150 = pneg %p61
        %p151 = pneg %p58
        %p152 = pneg %p87
        %p153 = pneg %p84
        %s154 = sand.u32 %s74, 1
        %s155 = scalar_lea.sflag [#allocation4], %s154
        %s156 = sand.u32 %s74, 1
        %s157 = smul.addr %s156, 8
        %s158 = scalar_lea.vmem [#allocation5], %s157
        %v159 = vld [vmem:[%s138] sm:$0xff]
        %vm160 = vcmask 261120
        %v161 = vsel %vm160, %v159, 0.0
        %162 = vadd.xlane.f32.xlu0 %v161
        %v163 = vpop.xlane.xlu0 %162
        %v164 = vmul.f32 %v159, %v159
        %v165 = vsel %vm160, %v164, 0.0
        %166 = vadd.xlane.f32.xlu0 %v165
        %v167 = vpop.xlane.xlu0 %166
        %v168 = vmul.f32 %v163, 0.03125
        %v169 = vmul.f32 %v167, 0.03125
        %v170 = vmul.f32 %v168, %v168
        %v171 = vsub.f32 %v169, %v170
        %v172 = vmax.f32 %v171, 0.0
        %v173 = vadd.f32 %v172, 1e-05
        %v174 = vrsqrt.pop %v173
        %v175 = vsub.f32 %v159, %v168
        %v176 = vmul.f32 %v175, %v174
        %v177 = vld [vmem:[%s1] sm:$0x1]
        %v179 = vlaneseq
        %v180 = vshrl.u32 %v179, 7
        %v181 = vsub.s32 0, %v180
        %v182 = vrot.slane %v177, %v181
        %v184 = vmul.f32 %v176, %v182
        %185 = vst.msk [vmem:[%s158] sm:$0xff] %vm160, %v184
        %s186 = sand.u32 %s74, 1
        %s187 = scalar_lea.sflag [#allocation4], %s186
        %s188 = sand.u32 %s74, 1
        %s189 = smul.addr %s188, 8
        %s190 = scalar_lea.vmem [#allocation5], %s189
        // Predicated region
        $region33: #{layernorm.1} parent=27 // pred_check
          %p191 = pneg %p84
        $region34: #{layernorm.1} parent=27 // pred_check_branch
          %193 = sbr.rel (%p191) target = $region36
        $region35: #{layernorm.1} parent=27 // pred_region
          %s195 = ssub.s32 128, 128
          %196 = vsyncadd %s187, %s195
          %s197 = smul.addr %s19, 128
          %s198 = scalar_lea.hbm %s2, %s197
          %s200 = sshll.u32 %s190, 4
          %s201 = int_to_ptr.vmem [resolvable:$true] %s200
          %203 = dma.vmem_to_hbm [thread:$0]  %s201, 128, %s198, %s187
        $region36: #{layernorm.1} parent=27 // pred_fallthru
          _
      $region28: #{layernorm.1} parent=5 // pred_fallthru
        _
      %p204 = scmp.le.s32.totalorder 2, %s14
      // Predicated region
      $region37: #{layernorm.1} parent=5 // pred_check
        %p205 = pneg %p204
      $region38: #{layernorm.1} parent=5 // pred_check_branch
        %207 = sbr.rel (%p205) target = $region40
      $region39: #{layernorm.1} parent=5 // pred_region
        %s208 = ssub.s32 %s14, 2
        // Predicated region
        $region41: #{layernorm.1} parent=39 // pred_check
          %p209 = pneg %p90
        $region42: #{layernorm.1} parent=39 // pred_check_branch
          %211 = sbr.rel (%p209) target = $region44
        $region43: #{layernorm.1} parent=39 // pred_region
          %s212 = sand.u32 %s75, 1
          %s213 = scalar_lea.sflag [#allocation4], %s212
          %s214 = sand.u32 %s75, 1
          %s215 = smul.addr %s214, 8
          %s216 = scalar_lea.vmem [#allocation5], %s215
          %217 = dma.done %s213, 128
        $region44: #{layernorm.1} parent=39 // pred_fallthru
          _
      $region40: #{layernorm.1} parent=5 // pred_fallthru
        _
    $region6: #{layernorm.1} parent=1 // loop_footer
      %s18 = sadd.s32 1, %s14
    $region7: #{layernorm.1} parent=1 // loop_footer_branch
      %13 = sbr.rel target = $region3
    $region8: #{layernorm.1} parent=1 // loop_exit
      _
    %218 = vsyncpa [#allocation3], 1
    %s219 = scalar_lea.sflag [#allocation3], 1
    %220 = vsyncpa %s219, 1
    %221 = vsyncpa [#allocation4], 1
    %s222 = scalar_lea.sflag [#allocation4], 1
    %223 = vsyncpa %s222, 1

</llo_original>
